<compile_context>
chip_gen: v7x
topology: tpu7x:2x2x1
jax: 0.10.0
libtpu: 0.0.40
codegen_flags: <defaults>
</compile_context>

<pallas_src>
import jax
import jax.numpy as jnp
from jax.experimental import pallas as pl
from jax.experimental.pallas import tpu as pltpu


def _chomp_copy_kernel(x_ref, o_ref):
    # Input and output blocks have identical shapes; the chomp lives in the
    # grid, so this is a plain whole-tile, lane-dense copy.
    o_ref[...] = x_ref[...]


def chomp1d(x: jax.Array, chomp_size: int, *, row_tile: int = 256,
            time_tile: int = 4096,
            tile_budget_bytes: int = 4 << 20) -> jax.Array:
    """Pallas equivalent of Chomp1d(chomp_size)(x) for x of shape (N, C, L)."""
    n, c, l = x.shape
    # TODO(synk): PyTorch's x[:, :, :-0] yields an empty tensor; we require
    # 0 < chomp_size < L (callers must not pass 0 expecting identity).
    assert 0 < chomp_size < l, "require 0 < chomp_size < L"
    l_out = l - chomp_size

    # Small-sequence fallback: with a sub-128 lane output every store would be
    # a masked partial store and pallas_call dispatch dominates -> plain slice.
    if l_out < 128:
        return jax.lax.slice(x, (0, 0, 0), (n, c, l_out))

    r = n * c
    x2 = x.reshape(r, l)              # free reshape for contiguous (N, C, L)
    itemsize = jnp.dtype(x.dtype).itemsize

    # ---- tile selection --------------------------------------------------
    # Rows: either all of them (block dim == full array dim) or 256-row chunks
    # (multiple of 32 -> valid sublane packing for f32/bf16/int8).
    tr = r if r <= row_tile else row_tile

    # Largest lane-aligned (multiple of 128) time tile that fits the per-tile
    # VMEM budget and does not exceed the output length.
    tl_budget = max(128, (tile_budget_bytes // (tr * itemsize)) // 128 * 128)
    tl = min(time_tile, tl_budget, max(128, (l_out // 128) * 128))

    # v7x shards "parallel" grid axes across its 2 TensorCores: avoid a
    # degenerate (1, 1) grid by splitting the time axis when it is splittable.
    if pl.cdiv(r, tr) == 1 and pl.cdiv(l_out, tl) == 1 and l_out >= 256:
        tl = max(128, ((l_out // 2) // 128) * 128)

    grid = (pl.cdiv(r, tr), pl.cdiv(l_out, tl))

    # Double-buffered input + output tiles, plus headroom; cap well under the
    # v7x 64 MiB physical VMEM (also safely above v5e's 16 MiB scoped default).
    tile_bytes = tr * tl * itemsize
    vmem_limit = int(min(4 * tile_bytes + (4 << 20), 48 << 20))

    out2 = pl.pallas_call(
        _chomp_copy_kernel,
        out_shape=jax.ShapeDtypeStruct((r, l_out), x.dtype),
        grid=grid,
        in_specs=[pl.BlockSpec((tr, tl), lambda i, t: (i, t))],
        out_specs=pl.BlockSpec((tr, tl), lambda i, t: (i, t)),
        compiler_params=pltpu.CompilerParams(
            dimension_semantics=("parallel", "parallel"),
            vmem_limit_bytes=vmem_limit),
        cost_estimate=pl.CostEstimate(
            flops=0,
            transcendentals=0,
            bytes_accessed=2 * r * l_out * itemsize),
    )(x2)
    return out2.reshape(n, c, l_out)


if __name__ == "__main__":
    k0, k1, k2 = jax.random.split(jax.random.PRNGKey(0), 3)

    # 1) Tiled Pallas path with a large out-of-bounds remainder on the final
    #    time block: r=16, l=384, chomp=4 -> l_out=380, tl=256, grid (1, 2);
    #    the last input block window [256, 512) extends past both l_out and l,
    #    exercising clipped input loads + masked output stores.
    chomp_a = 4
    x_a = jax.random.normal(k0, (2, 8, 384), dtype=jnp.float32)
    y_a = jax.block_until_ready(chomp1d(x_a, chomp_a))
    assert y_a.shape == (2, 8, 384 - chomp_a), y_a.shape
    assert y_a.dtype == x_a.dtype
    assert jnp.array_equal(y_a, x_a[:, :, :-chomp_a]), \
        "Pallas Chomp1d mismatch vs reference (tiled, OOB remainder)"

    # 2) Degenerate-grid guard: l=516, chomp=4 -> l_out=512 would fit a single
    #    time block; the time axis is split so the grid is (1, 2) for v7x.
    chomp_b = 4
    x_b = jax.random.normal(k1, (2, 4, 516), dtype=jnp.float32)
    y_b = jax.block_until_ready(chomp1d(x_b, chomp_b))
    assert y_b.shape == (2, 4, 516 - chomp_b), y_b.shape
    assert jnp.array_equal(y_b, x_b[:, :, :-chomp_b]), \
        "Pallas Chomp1d mismatch vs reference (split grid)"

    # 3) Small-sequence fallback (l_out < 128) -> plain XLA slice.
    chomp_c = 4
    x_c = jax.random.normal(k2, (2, 4, 16), dtype=jnp.float32)
    y_c = jax.block_until_ready(chomp1d(x_c, chomp_c))
    assert y_c.shape == (2, 4, 16 - chomp_c), y_c.shape
    assert jnp.array_equal(y_c, x_c[:, :, :-chomp_c]), \
        "Chomp1d mismatch vs reference (small fallback)"

    print("KERNEL_OK")
</pallas_src>

<mosaic_0001>
module attributes {stable_mosaic.version = 11 : i64} {
  func.func @_chomp_copy_kernel(%arg0: i32, %arg1: i32, %arg2: memref<16x256xf32, #tpu.memory_space<vmem>>, %arg3: memref<16x256xf32, #tpu.memory_space<vmem>>) attributes {dimension_semantics = [#tpu.dimension_semantics<parallel>, #tpu.dimension_semantics<parallel>], iteration_bounds = array<i64: 1, 2>, scalar_prefetch = 0 : i64, scratch_operands = 0 : i64, tpu.core_type = #tpu.core_type<tc>, window_params = [{transform_indices = @transform_0, window_bounds = array<i64: 16, 256>}, {transform_indices = @transform_1, window_bounds = array<i64: 16, 256>}]} {
    %c0 = arith.constant 0 : index
    %c0_0 = arith.constant 0 : index
    %0 = vector.load %arg2[%c0, %c0_0] : memref<16x256xf32, #tpu.memory_space<vmem>>, vector<16x256xf32>
    %c0_1 = arith.constant 0 : index
    %c0_2 = arith.constant 0 : index
    %1 = vector.load %arg3[%c0_1, %c0_2] : memref<16x256xf32, #tpu.memory_space<vmem>>, vector<16x256xf32>
    tpu.vector_store %arg3[%c0_1, %c0_2], %0 {strides = array<i32>} : memref<16x256xf32, #tpu.memory_space<vmem>>, vector<16x256xf32>,
    return
  }
  func.func @transform_0(%arg0: i32, %arg1: i32) -> (i32, i32) {
    %c0_i32 = arith.constant 0 : i32
    return %arg0, %arg1 : i32, i32
  }
  func.func @transform_1(%arg0: i32, %arg1: i32) -> (i32, i32) {
    %c0_i32 = arith.constant 0 : i32
    return %arg0, %arg1 : i32, i32
  }
}

</mosaic_0001>

<llo_original>
// kernel: tpu_custom_call.1
$region0: #{tpu_custom_call.1}
  #allocation0 [shape = 'u32[]', space=smem, size = 0x4, offset = 0x4, fixed_abs, tag = 'smem constant byte address 0x4 - core index']
  #allocation1 [shape = 'u32[144,128]{1,0:T(1,128)}', space=vmem, size = 0x12000, scoped, tag = 'internal scratch']
  %s0 = inlined_call_operand.hbm [shape: f32[16,384], index: 0, kind: input, shape index: {}]
  %s1 = inlined_call_operand.hbm [shape: f32[16,380], index: 1, kind: output, shape index: {}]
  %s2 = sld [smem:[#allocation0]]
  $region41: #{tpu_custom_call.1} parent=0
    _
  %s4 = ssub.s32 1, %s2
  %s5 = scalar_select 0, %s4, %s2
  $region1: #{tpu_custom_call.1} parent=0
    #allocation2 [shape = 'u8[32768]{0}', space=vmem, size = 0x8000, scoped, tag = 'input window, operand 0']
    #allocation3 [shape = 's32[2]{0}', space=sflag, size = 0x8, scoped, tag = 'scoped memory for tpu_custom_call.1']
    #allocation4 [shape = 's32[2]{0}', space=sflag, size = 0x8, scoped, tag = 'scoped memory for tpu_custom_call.1']
    #allocation5 [shape = 'u8[32768]{0}', space=vmem, size = 0x8000, scoped, tag = 'output window, operand 0']
    %6 = vsyncpa [#allocation3], 0
    %s7 = scalar_lea.sflag [#allocation3], 1
    %8 = vsyncpa %s7, 0
    %9 = vsyncpa [#allocation4], 0
    %s10 = scalar_lea.sflag [#allocation4], 1
    %11 = vsyncpa %s10, 0
    loop: start=0, step=1, limit=4
    $region2: #{tpu_custom_call.1} parent=1 // loop_pre_header
      _
    $region3: #{tpu_custom_call.1} parent=1 // loop_header
      %s13 = sphi 0, %s17
      %p14 = scmp.ge.s32.totalorder %s13, 4
      %s20 = sphi 0, %s32
      %s21 = sphi 0, %s28
      %s22 = sphi 0, %s20
      %s23 = sphi 0, %s21
      %s24 = sphi 0, %s22
      %s25 = sphi 0, %s23
      %s37 = sphi 0, %s39
      %s40 = sphi 0, %s37
      %s41 = sphi 0, %s40
      %s57 = sphi 0, %s41
      %s65 = sphi 0, %s67
      %s68 = sphi 0, %s65
      %s69 = sphi 0, %s68
      %s85 = sphi 0, %s69
    $region4: #{tpu_custom_call.1} parent=1 // loop_header_branch
      %16 = sbr.rel (%p14) target = $region8
    $region5: #{tpu_custom_call.1} parent=1 // loop_body
      %s18 = ssub.s32 %s13, 1
      %s19 = ssub.s32 %s13, 2
      %s26 = sadd.s32 1, %s21
      %p27 = scmp.ge.s32.totalorder %s26, 2
      %s28 = scalar_select %p27, 0, %s26
      %s29 = sadd.s32 1, %s20
      %s30 = scalar_select %p27, %s29, %s20
      %p31 = scmp.ge.s32.totalorder %s30, 1
      %s32 = scalar_select %p31, 0, %s30
      %s33 = ssub.s32 %s20, %s32
      %s34 = ssub.s32 %s21, %s28
      %s35 = sor.u32 %s33, %s34
      %p36 = scmp.eq.s32.totalorder %s35, 0
      %s38 = sadd.s32 %s37, 1
      %s39 = scalar_select %p36, %s37, %s38
      %p42 = pneg %p36
      %p43 = scmp.eq.s32.totalorder %s13, 1
      %p44 = por %p42, %p43
      %p45 = scmp.ne.s32.totalorder %s37, %s40
      %p46 = scmp.eq.s32.totalorder %s13, 0
      %p47 = por %p45, %p46
      %p48 = scmp.ne.s32.totalorder %s37, %s40
      %p49 = scmp.eq.s32.totalorder %s18, 1
      %p50 = por %p48, %p49
      %p51 = scmp.ne.s32.totalorder %s40, %s41
      %p52 = scmp.eq.s32.totalorder %s18, 0
      %p53 = por %p51, %p52
      %p54 = scmp.ne.s32.totalorder %s40, %s41
      %p55 = scmp.eq.s32.totalorder %s19, 1
      %p56 = por %p54, %p55
      %p58 = scmp.ne.s32.totalorder %s41, %s57
      %p59 = scmp.eq.s32.totalorder %s19, 0
      %p60 = por %p58, %p59
      %s61 = ssub.s32 %s20, %s32
      %s62 = ssub.s32 %s21, %s28
      %s63 = sor.u32 %s61, %s62
      %p64 = scmp.eq.s32.totalorder %s63, 0
      %s66 = sadd.s32 %s65, 1
      %s67 = scalar_select %p64, %s65, %s66
      %p70 = pneg %p64
      %p71 = scmp.eq.s32.totalorder %s13, 1
      %p72 = por %p70, %p71
      %p73 = scmp.ne.s32.totalorder %s65, %s68
      %p74 = scmp.eq.s32.totalorder %s13, 0
      %p75 = por %p73, %p74
      %p76 = scmp.ne.s32.totalorder %s65, %s68
      %p77 = scmp.eq.s32.totalorder %s18, 1
      %p78 = por %p76, %p77
      %p79 = scmp.ne.s32.totalorder %s68, %s69
      %p80 = scmp.eq.s32.totalorder %s18, 0
      %p81 = por %p79, %p80
      %p82 = scmp.ne.s32.totalorder %s68, %s69
      %p83 = scmp.eq.s32.totalorder %s19, 1
      %p84 = por %p82, %p83
      %p86 = scmp.ne.s32.totalorder %s69, %s85
      %p87 = scmp.eq.s32.totalorder %s19, 0
      %p88 = por %p86, %p87
      %p89 = scmp.le.s32.totalorder 1, %s13
      %p90 = scmp.lt.s32.totalorder %s13, 3
      %p91 = pnand %p89, %p90
      %p92 = pneg %p91
      // Predicated region
      $region9: #{tpu_custom_call.1} parent=5 // pred_check
        _
      $region10: #{tpu_custom_call.1} parent=5 // pred_check_branch
        %94 = sbr.rel (%p91) target = $region12
      $region11: #{tpu_custom_call.1} parent=5 // pred_region
        %s95 = ssub.s32 %s13, 1
      $region12: #{tpu_custom_call.1} parent=5 // pred_fallthru
        _
      %p96 = scmp.lt.s32.totalorder %s13, 2
      // Predicated region
      $region13: #{tpu_custom_call.1} parent=5 // pred_check
        %p97 = pneg %p96
      $region14: #{tpu_custom_call.1} parent=5 // pred_check_branch
        %99 = sbr.rel (%p97) target = $region16
      $region15: #{tpu_custom_call.1} parent=5 // pred_region
        // Predicated region
        $region17: #{tpu_custom_call.1} parent=15 // pred_check
          %p100 = pneg %p47
        $region18: #{tpu_custom_call.1} parent=15 // pred_check_branch
          %102 = sbr.rel (%p100) target = $region20
        $region19: #{tpu_custom_call.1} parent=15 // pred_region
          %s103 = sand.u32 %s37, 1
          %s104 = scalar_lea.sflag [#allocation3], %s103
          %s105 = sand.u32 %s37, 1
          %s106 = smul.addr %s105, 32
          %s107 = scalar_lea.vmem [#allocation2], %s106
          %s108 = smul.u32 2, %s20
          %s109 = smul.u32 2, %s21
          %s110 = ssub.s32 3, %s109
          %p111 = scmp.lt.s32.totalorder %s110, 2
          %s112 = scalar_select %p111, %s110, 2
          %s113 = smul.u32 256, %s112
          %s115 = ssub.s32 512, %s113
          %116 = vsyncadd %s104, %s115
          %p117 = scmp.ne.s32.totalorder 0, %s113
          %s118 = smul.addr %s108, 3
          %s119 = sadd.s32 %s109, %s118
          %s120 = smul.addr %s119, 128
          %s121 = scalar_lea.hbm %s0, %s120
          %s122 = smul.u32 %s112, 8
          %s123 = smul.u32 %s122, 2
          %s124 = sshll.u32 %s107, 4
          %s125 = int_to_ptr.vmem [resolvable:$true] %s124
          %s126 = sshll.u32 %s123, 4
          %130 = dma.hbm_to_vmem [thread:$0]  (%p117), %s121, %s126, %s125, %s104, 384, 256, %s122
        $region20: #{tpu_custom_call.1} parent=15 // pred_fallthru
          _
      $region16: #{tpu_custom_call.1} parent=5 // pred_fallthru
        _
      %p131 = scmp.le.s32.totalorder 1, %s13
      %p132 = scmp.lt.s32.totalorder %s13, 3
      %p133 = pnand %p131, %p132
      %p134 = pneg %p133
      // Predicated region
      $region21: #{tpu_custom_call.1} parent=5 // pred_check
        _
      $region22: #{tpu_custom_call.1} parent=5 // pred_check_branch
        %136 = sbr.rel (%p133) target = $region24
      $region23: #{tpu_custom_call.1} parent=5 // pred_region
        %s137 = ssub.s32 %s13, 1
        %s138 = sand.u32 %s40, 1
        %s139 = scalar_lea.sflag [#allocation3], %s138
        %s140 = sand.u32 %s40, 1
        %s141 = smul.addr %s140, 32
        %s142 = scalar_lea.vmem [#allocation2], %s141
        // Predicated region
        $region25: #{tpu_custom_call.1} parent=23 // pred_check
          %p143 = pneg %p53
        $region26: #{tpu_custom_call.1} parent=23 // pred_check_branch
          %145 = sbr.rel (%p143) target = $region28
        $region27: #{tpu_custom_call.1} parent=23 // pred_region
          %146 = dma.done %s139, 512
        $region28: #{tpu_custom_call.1} parent=23 // pred_fallthru
          _
        %s147 = sand.u32 %s40, 1
        %s148 = scalar_lea.sflag [#allocation3], %s147
        %s149 = sand.u32 %s40, 1
        %s150 = smul.addr %s149, 32
        %s151 = scalar_lea.vmem [#allocation2], %s150
        %p152 = pneg %p53
        %p153 = pneg %p50
        %p154 = pneg %p81
        %p155 = pneg %p78
        %s156 = sand.u32 %s68, 1
        %s157 = scalar_lea.sflag [#allocation4], %s156
        %s158 = sand.u32 %s68, 1
        %s159 = smul.addr %s158, 32
        %s160 = scalar_lea.vmem [#allocation5], %s159
        %s161 = smul.u32 2, %s22
        %s162 = smul.u32 2, %s23
        %s163 = ssub.s32 3, %s162
        %p164 = scmp.lt.s32.totalorder %s163, 2
        %s165 = scalar_select %p164, %s163, 2
        %s166 = smul.u32 256, %s165
        %s167 = smul.u32 2, %s22
        %s168 = smul.u32 2, %s23
        %s169 = ssub.s32 3, %s168
        %p170 = scmp.lt.s32.totalorder %s169, 2
        %s171 = scalar_select %p170, %s169, 2
        %s172 = smul.u32 256, %s171
        %v173 = vld [vmem:[%s142] sm:$0xff]
        %v174 = vld [vmem:[%s142 + $0x8] sm:$0xff]
        %v175 = vld [vmem:[%s142 + $0x10] sm:$0xff]
        %v176 = vld [vmem:[%s142 + $0x18] sm:$0xff]
        %177 = vst [vmem:[%s160] sm:$0xff] %v173
        %178 = vst [vmem:[%s160 + $0x8] sm:$0xff] %v174
        %179 = vst [vmem:[%s160 + $0x10] sm:$0xff] %v175
        %180 = vst [vmem:[%s160 + $0x18] sm:$0xff] %v176
        %s181 = sand.u32 %s68, 1
        %s182 = scalar_lea.sflag [#allocation4], %s181
        %s183 = sand.u32 %s68, 1
        %s184 = smul.addr %s183, 32
        %s185 = scalar_lea.vmem [#allocation5], %s184
        // Predicated region
        $region29: #{tpu_custom_call.1} parent=23 // pred_check
          %p186 = pneg %p78
        $region30: #{tpu_custom_call.1} parent=23 // pred_check_branch
          %188 = sbr.rel (%p186) target = $region32
        $region31: #{tpu_custom_call.1} parent=23 // pred_region
          %s189 = smul.u32 2, %s22
          %s190 = smul.u32 2, %s23
          %s191 = ssub.s32 3, %s190
          %p192 = scmp.lt.s32.totalorder %s191, 2
          %s193 = scalar_select %p192, %s191, 2
          %s194 = smul.u32 256, %s193
          %s196 = ssub.s32 512, %s194
          %197 = vsyncadd %s182, %s196
          %p198 = scmp.ne.s32.totalorder 0, %s194
          %s199 = smul.addr %s189, 3
          %s200 = sadd.s32 %s190, %s199
          %s201 = smul.addr %s200, 128
          %s202 = scalar_lea.hbm %s1, %s201
          %s203 = smul.u32 %s193, 8
          %s204 = smul.u32 %s203, 2
          %s205 = sshll.u32 %s185, 4
          %s206 = int_to_ptr.vmem [resolvable:$true] %s205
          %s207 = sshll.u32 %s204, 4
          %211 = dma.vmem_to_hbm [thread:$0]  (%p198), %s206, %s207, %s202, %s182, 256, 384, %s203
        $region32: #{tpu_custom_call.1} parent=23 // pred_fallthru
          _
      $region24: #{tpu_custom_call.1} parent=5 // pred_fallthru
        _
      %p212 = scmp.le.s32.totalorder 2, %s13
      // Predicated region
      $region33: #{tpu_custom_call.1} parent=5 // pred_check
        %p213 = pneg %p212
      $region34: #{tpu_custom_call.1} parent=5 // pred_check_branch
        %215 = sbr.rel (%p213) target = $region36
      $region35: #{tpu_custom_call.1} parent=5 // pred_region
        %s216 = ssub.s32 %s13, 2
        // Predicated region
        $region37: #{tpu_custom_call.1} parent=35 // pred_check
          %p217 = pneg %p84
        $region38: #{tpu_custom_call.1} parent=35 // pred_check_branch
          %219 = sbr.rel (%p217) target = $region40
        $region39: #{tpu_custom_call.1} parent=35 // pred_region
          %s220 = sand.u32 %s69, 1
          %s221 = scalar_lea.sflag [#allocation4], %s220
          %s222 = sand.u32 %s69, 1
          %s223 = smul.addr %s222, 32
          %s224 = scalar_lea.vmem [#allocation5], %s223
          %225 = dma.done %s221, 512
        $region40: #{tpu_custom_call.1} parent=35 // pred_fallthru
          _
      $region36: #{tpu_custom_call.1} parent=5 // pred_fallthru
        _
    $region6: #{tpu_custom_call.1} parent=1 // loop_footer
      %s17 = sadd.s32 1, %s13
    $region7: #{tpu_custom_call.1} parent=1 // loop_footer_branch
      %12 = sbr.rel target = $region3
    $region8: #{tpu_custom_call.1} parent=1 // loop_exit
      _
    %226 = vsyncpa [#allocation3], 1
    %s227 = scalar_lea.sflag [#allocation3], 1
    %228 = vsyncpa %s227, 1
    %229 = vsyncpa [#allocation4], 1
    %s230 = scalar_lea.sflag [#allocation4], 1
    %231 = vsyncpa %s230, 1

</llo_original>
